<compile_context>
chip_gen: v7x
topology: tpu7x:2x2x1
jax: 0.10.0
libtpu: 0.0.40
codegen_flags: <defaults>
</compile_context>

<pallas_src>
import functools

import jax
import jax.numpy as jnp
from jax.experimental import pallas as pl
from jax.experimental.pallas import tpu as pltpu

D_LATENT = 100       # PyTorch latent dim
D_LATENT_PAD = 128   # 100 -> 128 (lane-aligned K)
D_HIDDEN = 256
D_OUT = 784          # 28*28
D_OUT_PAD = 896      # 784 -> 896 = 7*128 (lane-dense output slab)


def generator_kernel(x_ref, w1_ref, b1_ref, w2_ref, b2_ref, w3_ref, b3_ref,
                     o_ref):
    # Layer 1: (tm,128) @ (128,256) + (1,256) -> LeakyReLU(0.2)
    h = jnp.dot(x_ref[...], w1_ref[...],
                preferred_element_type=jnp.float32) + b1_ref[...]
    h = jnp.maximum(h, 0.2 * h)               # LeakyReLU(0.2), slope < 1
    # Layer 2: (tm,256) @ (256,256) + (1,256) -> LeakyReLU(0.2)
    h = jnp.dot(h, w2_ref[...],
                preferred_element_type=jnp.float32) + b2_ref[...]
    h = jnp.maximum(h, 0.2 * h)
    # Layer 3: (tm,256) @ (256,896) + (1,896) -> Tanh
    h = jnp.dot(h, w3_ref[...],
                preferred_element_type=jnp.float32) + b3_ref[...]
    o_ref[...] = jnp.tanh(h)


def _round_up(n, m):
    return ((n + m - 1) // m) * m


@functools.partial(jax.jit, static_argnames=("tm",))
def generator_forward(x, params, *, tm=None):
    """x: (B, 100) float32 -> (B, 1, 28, 28) float32 (NCHW)."""
    w1, b1, w2, b2, w3, b3 = params
    B, D_in = x.shape
    assert D_in == D_LATENT

    # Big M tiles fill the MXU; cap at 256 rows so large batches keep >=2 grid
    # steps (megacore) and VMEM stays small (~2.5 MB of tiles double-buffered).
    if tm is None:
        tm = min(256, _round_up(B, 8))
    B_pad = _round_up(B, tm)
    n_steps = B_pad // tm

    # Zero-pad: batch rows + latent 100->128 on x, matching rows on W1,
    # output columns 784->896 on W3/b3.  Zeros contribute nothing to the dots.
    x_p = jnp.pad(x, ((0, B_pad - B), (0, D_LATENT_PAD - D_LATENT)))
    w1_p = jnp.pad(w1, ((0, D_LATENT_PAD - D_LATENT), (0, 0)))
    w3_p = jnp.pad(w3, ((0, 0), (0, D_OUT_PAD - D_OUT)))
    b3_p = jnp.pad(b3, ((0, 0), (0, D_OUT_PAD - D_OUT)))

    flops = 2 * B_pad * (D_LATENT_PAD * D_HIDDEN
                         + D_HIDDEN * D_HIDDEN
                         + D_HIDDEN * D_OUT_PAD)
    bytes_accessed = 4 * (B_pad * D_LATENT_PAD + B_pad * D_OUT_PAD
                          + D_LATENT_PAD * D_HIDDEN + D_HIDDEN
                          + D_HIDDEN * D_HIDDEN + D_HIDDEN
                          + D_HIDDEN * D_OUT_PAD + D_OUT_PAD)

    out = pl.pallas_call(
        generator_kernel,
        out_shape=jax.ShapeDtypeStruct((B_pad, D_OUT_PAD), jnp.float32),
        grid_spec=pltpu.PrefetchScalarGridSpec(
            num_scalar_prefetch=0,
            grid=(n_steps,),
            in_specs=[
                pl.BlockSpec((tm, D_LATENT_PAD),       lambda i: (i, 0)),  # x tile
                pl.BlockSpec((D_LATENT_PAD, D_HIDDEN), lambda i: (0, 0)),  # W1
                pl.BlockSpec((1, D_HIDDEN),            lambda i: (0, 0)),  # b1
                pl.BlockSpec((D_HIDDEN, D_HIDDEN),     lambda i: (0, 0)),  # W2
                pl.BlockSpec((1, D_HIDDEN),            lambda i: (0, 0)),  # b2
                pl.BlockSpec((D_HIDDEN, D_OUT_PAD),    lambda i: (0, 0)),  # W3
                pl.BlockSpec((1, D_OUT_PAD),           lambda i: (0, 0)),  # b3
            ],
            out_specs=pl.BlockSpec((tm, D_OUT_PAD), lambda i: (i, 0)),
        ),
        compiler_params=pltpu.CompilerParams(
            dimension_semantics=("parallel",)),
        cost_estimate=pl.CostEstimate(
            flops=flops,
            transcendentals=B_pad * D_OUT_PAD,   # tanh
            bytes_accessed=bytes_accessed),
    )(x_p, w1_p, b1, w2, b2, w3_p, b3_p)

    # Drop padding, then view(B, 1, 28, 28) — metadata-only reshape, NCHW.
    return out[:B, :D_OUT].reshape(B, 1, 28, 28)


def init_params(key):
    """Torch nn.Linear default init: U(-1/sqrt(fan_in), 1/sqrt(fan_in))."""
    def linear(k, fan_in, fan_out):
        kw, kb = jax.random.split(k)
        bound = 1.0 / jnp.sqrt(fan_in)
        w = jax.random.uniform(kw, (fan_in, fan_out), jnp.float32, -bound, bound)
        b = jax.random.uniform(kb, (1, fan_out), jnp.float32, -bound, bound)
        return w, b

    k1, k2, k3 = jax.random.split(key, 3)
    w1, b1 = linear(k1, 100, 256)
    w2, b2 = linear(k2, 256, 256)
    w3, b3 = linear(k3, 256, 784)
    return (w1, b1, w2, b2, w3, b3)


if __name__ == "__main__":
    key = jax.random.PRNGKey(0)
    k_x, k_p = jax.random.split(key)

    B = 8  # small batch; latent dim fixed at 100 by the module
    x = jax.random.normal(k_x, (B, 100), dtype=jnp.float32)
    params = init_params(k_p)

    y = generator_forward(x, params)
    y = jax.block_until_ready(y)

    # Pure-JAX reference check of the forward pass.
    w1, b1, w2, b2, w3, b3 = params
    h = x @ w1 + b1
    h = jnp.where(h > 0, h, 0.2 * h)
    h = h @ w2 + b2
    h = jnp.where(h > 0, h, 0.2 * h)
    ref = jnp.tanh(h @ w3 + b3).reshape(B, 1, 28, 28)
    assert y.shape == (B, 1, 28, 28)
    assert jnp.max(jnp.abs(y - ref)) < 1e-5

    print("KERNEL_OK")
</pallas_src>

<mosaic_0001>
module attributes {stable_mosaic.version = 11 : i64} {
  func.func @generator_kernel(%arg0: i32, %arg1: memref<8x128xf32, #tpu.memory_space<vmem>>, %arg2: memref<128x256xf32, #tpu.memory_space<vmem>>, %arg3: memref<1x256xf32, #tpu.memory_space<vmem>>, %arg4: memref<256x256xf32, #tpu.memory_space<vmem>>, %arg5: memref<1x256xf32, #tpu.memory_space<vmem>>, %arg6: memref<256x896xf32, #tpu.memory_space<vmem>>, %arg7: memref<1x896xf32, #tpu.memory_space<vmem>>, %arg8: memref<8x896xf32, #tpu.memory_space<vmem>>) attributes {dimension_semantics = [#tpu.dimension_semantics<parallel>], iteration_bounds = array<i64: 1>, scalar_prefetch = 0 : i64, scratch_operands = 0 : i64, tpu.core_type = #tpu.core_type<tc>, window_params = [{transform_indices = @transform_0, window_bounds = array<i64: 8, 128>}, {pipeline_mode = #tpu.pipeline_mode<synchronous>, transform_indices = @transform_1, window_bounds = array<i64: 128, 256>}, {pipeline_mode = #tpu.pipeline_mode<synchronous>, transform_indices = @transform_2, window_bounds = array<i64: 1, 256>}, {pipeline_mode = #tpu.pipeline_mode<synchronous>, transform_indices = @transform_3, window_bounds = array<i64: 256, 256>}, {pipeline_mode = #tpu.pipeline_mode<synchronous>, transform_indices = @transform_4, window_bounds = array<i64: 1, 256>}, {pipeline_mode = #tpu.pipeline_mode<synchronous>, transform_indices = @transform_5, window_bounds = array<i64: 256, 896>}, {pipeline_mode = #tpu.pipeline_mode<synchronous>, transform_indices = @transform_6, window_bounds = array<i64: 1, 896>}, {transform_indices = @transform_7, window_bounds = array<i64: 8, 896>}]} {
    %c0 = arith.constant 0 : index
    %c0_0 = arith.constant 0 : index
    %0 = vector.load %arg1[%c0, %c0_0] : memref<8x128xf32, #tpu.memory_space<vmem>>, vector<8x128xf32>
    %c0_1 = arith.constant 0 : index
    %c0_2 = arith.constant 0 : index
    %1 = vector.load %arg2[%c0_1, %c0_2] : memref<128x256xf32, #tpu.memory_space<vmem>>, vector<128x256xf32>
    %cst = arith.constant dense<0.000000e+00> : vector<8x256xf32>
    %2 = tpu.matmul %0, %1, %cst {dimension_numbers = #tpu.dot_dimension_numbers<[1], [0], [0], [1], [0, 0, 1, 1], [], []>} : vector<8x128xf32>, vector<128x256xf32>, vector<8x256xf32> -> vector<8x256xf32>
    %c0_3 = arith.constant 0 : index
    %c0_4 = arith.constant 0 : index
    %3 = vector.load %arg3[%c0_3, %c0_4] : memref<1x256xf32, #tpu.memory_space<vmem>>, vector<1x256xf32>
    %4 = vector.broadcast %3 : vector<1x256xf32> to vector<8x256xf32>
    %5 = arith.addf %2, %4 : vector<8x256xf32>
    %cst_5 = arith.constant 2.000000e-01 : f32
    %6 = vector.broadcast %cst_5 : f32 to vector<8x256xf32>
    %7 = arith.mulf %6, %5 : vector<8x256xf32>
    %8 = arith.maximumf %5, %7 : vector<8x256xf32>
    %c0_6 = arith.constant 0 : index
    %c0_7 = arith.constant 0 : index
    %9 = vector.load %arg4[%c0_6, %c0_7] : memref<256x256xf32, #tpu.memory_space<vmem>>, vector<256x256xf32>
    %cst_8 = arith.constant dense<0.000000e+00> : vector<8x256xf32>
    %10 = tpu.matmul %8, %9, %cst_8 {dimension_numbers = #tpu.dot_dimension_numbers<[1], [0], [0], [1], [0, 0, 1, 1], [], []>} : vector<8x256xf32>, vector<256x256xf32>, vector<8x256xf32> -> vector<8x256xf32>
    %c0_9 = arith.constant 0 : index
    %c0_10 = arith.constant 0 : index
    %11 = vector.load %arg5[%c0_9, %c0_10] : memref<1x256xf32, #tpu.memory_space<vmem>>, vector<1x256xf32>
    %12 = vector.broadcast %11 : vector<1x256xf32> to vector<8x256xf32>
    %13 = arith.addf %10, %12 : vector<8x256xf32>
    %cst_11 = arith.constant 2.000000e-01 : f32
    %14 = vector.broadcast %cst_11 : f32 to vector<8x256xf32>
    %15 = arith.mulf %14, %13 : vector<8x256xf32>
    %16 = arith.maximumf %13, %15 : vector<8x256xf32>
    %c0_12 = arith.constant 0 : index
    %c0_13 = arith.constant 0 : index
    %17 = vector.load %arg6[%c0_12, %c0_13] : memref<256x896xf32, #tpu.memory_space<vmem>>, vector<256x896xf32>
    %cst_14 = arith.constant dense<0.000000e+00> : vector<8x896xf32>
    %18 = tpu.matmul %16, %17, %cst_14 {dimension_numbers = #tpu.dot_dimension_numbers<[1], [0], [0], [1], [0, 0, 1, 1], [], []>} : vector<8x256xf32>, vector<256x896xf32>, vector<8x896xf32> -> vector<8x896xf32>
    %c0_15 = arith.constant 0 : index
    %c0_16 = arith.constant 0 : index
    %19 = vector.load %arg7[%c0_15, %c0_16] : memref<1x896xf32, #tpu.memory_space<vmem>>, vector<1x896xf32>
    %20 = vector.broadcast %19 : vector<1x896xf32> to vector<8x896xf32>
    %21 = arith.addf %18, %20 : vector<8x896xf32>
    %22 = math.tanh %21 : vector<8x896xf32>
    %c0_17 = arith.constant 0 : index
    %c0_18 = arith.constant 0 : index
    %23 = vector.load %arg8[%c0_17, %c0_18] : memref<8x896xf32, #tpu.memory_space<vmem>>, vector<8x896xf32>
    tpu.vector_store %arg8[%c0_17, %c0_18], %22 {strides = array<i32>} : memref<8x896xf32, #tpu.memory_space<vmem>>, vector<8x896xf32>,
    return
  }
  func.func @transform_0(%arg0: i32) -> (i32, i32) {
    %c0_i32 = arith.constant 0 : i32
    %c0_i32_0 = arith.constant 0 : i32
    return %arg0, %c0_i32 : i32, i32
  }
  func.func @transform_1(%arg0: i32) -> (i32, i32) {
    %c0_i32 = arith.constant 0 : i32
    %c0_i32_0 = arith.constant 0 : i32
    %c0_i32_1 = arith.constant 0 : i32
    return %c0_i32, %c0_i32_0 : i32, i32
  }
  func.func @transform_2(%arg0: i32) -> (i32, i32) {
    %c0_i32 = arith.constant 0 : i32
    %c0_i32_0 = arith.constant 0 : i32
    %c0_i32_1 = arith.constant 0 : i32
    return %c0_i32, %c0_i32_0 : i32, i32
  }
  func.func @transform_3(%arg0: i32) -> (i32, i32) {
    %c0_i32 = arith.constant 0 : i32
    %c0_i32_0 = arith.constant 0 : i32
    %c0_i32_1 = arith.constant 0 : i32
    return %c0_i32, %c0_i32_0 : i32, i32
  }
  func.func @transform_4(%arg0: i32) -> (i32, i32) {
    %c0_i32 = arith.constant 0 : i32
    %c0_i32_0 = arith.constant 0 : i32
    %c0_i32_1 = arith.constant 0 : i32
    return %c0_i32, %c0_i32_0 : i32, i32
  }
  func.func @transform_5(%arg0: i32) -> (i32, i32) {
    %c0_i32 = arith.constant 0 : i32
    %c0_i32_0 = arith.constant 0 : i32
    %c0_i32_1 = arith.constant 0 : i32
    return %c0_i32, %c0_i32_0 : i32, i32
  }
  func.func @transform_6(%arg0: i32) -> (i32, i32) {
    %c0_i32 = arith.constant 0 : i32
    %c0_i32_0 = arith.constant 0 : i32
    %c0_i32_1 = arith.constant 0 : i32
    return %c0_i32, %c0_i32_0 : i32, i32
  }
  func.func @transform_7(%arg0: i32) -> (i32, i32) {
    %c0_i32 = arith.constant 0 : i32
    %c0_i32_0 = arith.constant 0 : i32
    return %arg0, %c0_i32 : i32, i32
  }
}

</mosaic_0001>

<llo_original>
// kernel: generator_forward.1
$region0: #{generator_forward.1}
  #allocation0 [shape = 'u32[]', space=smem, size = 0x4, offset = 0x4, fixed_abs, tag = 'smem constant byte address 0x4 - core index']
  #allocation1 [shape = 'u32[144,128]{1,0:T(1,128)}', space=vmem, size = 0x12000, scoped, tag = 'internal scratch']
  %s0 = inlined_call_operand.vmem [shape: f32[8,128], index: 0, kind: input, shape index: {}]
  %s1 = inlined_call_operand.vmem [shape: f32[128,256], index: 1, kind: input, shape index: {}]
  %s2 = inlined_call_operand.vmem [shape: f32[1,256], index: 2, kind: input, shape index: {}]
  %s3 = inlined_call_operand.vmem [shape: f32[256,256], index: 3, kind: input, shape index: {}]
  %s4 = inlined_call_operand.vmem [shape: f32[1,256], index: 4, kind: input, shape index: {}]
  %s5 = inlined_call_operand.vmem [shape: f32[256,896], index: 5, kind: input, shape index: {}]
  %s6 = inlined_call_operand.vmem [shape: f32[1,896], index: 6, kind: input, shape index: {}]
  %s7 = inlined_call_operand.vmem [shape: f32[8,896], index: 7, kind: output, shape index: {}]
  %s8 = sld [smem:[#allocation0]]
  $region38: #{generator_forward.1} parent=0
    _
  %s10 = ssub.s32 1, %s8
  %s11 = scalar_select 0, %s10, %s8
  // Predicated region
  $region2: #{generator_forward.1} parent=0 // pred_check
    _
  $region3: #{generator_forward.1} parent=0 // pred_check_branch
    %13 = sbr.rel (0) target = $region5
  $region4: #{generator_forward.1} parent=0 // pred_region
    _
  $region5: #{generator_forward.1} parent=0 // pred_fallthru
    _
  // Predicated region
  $region6: #{generator_forward.1} parent=0 // pred_check
    _
  $region7: #{generator_forward.1} parent=0 // pred_check_branch
    %15 = sbr.rel (0) target = $region9
  $region8: #{generator_forward.1} parent=0 // pred_region
    _
  $region9: #{generator_forward.1} parent=0 // pred_fallthru
    _
  // Predicated region
  $region10: #{generator_forward.1} parent=0 // pred_check
    _
  $region11: #{generator_forward.1} parent=0 // pred_check_branch
    %17 = sbr.rel (0) target = $region13
  $region12: #{generator_forward.1} parent=0 // pred_region
    _
  $region13: #{generator_forward.1} parent=0 // pred_fallthru
    _
  // Predicated region
  $region14: #{generator_forward.1} parent=0 // pred_check
    _
  $region15: #{generator_forward.1} parent=0 // pred_check_branch
    %19 = sbr.rel (0) target = $region17
  $region16: #{generator_forward.1} parent=0 // pred_region
    _
  $region17: #{generator_forward.1} parent=0 // pred_fallthru
    _
  // Predicated region
  $region18: #{generator_forward.1} parent=0 // pred_check
    _
  $region19: #{generator_forward.1} parent=0 // pred_check_branch
    %21 = sbr.rel (0) target = $region21
  $region20: #{generator_forward.1} parent=0 // pred_region
    _
  $region21: #{generator_forward.1} parent=0 // pred_fallthru
    _
  // Predicated region
  $region22: #{generator_forward.1} parent=0 // pred_check
    _
  $region23: #{generator_forward.1} parent=0 // pred_check_branch
    %23 = sbr.rel (0) target = $region25
  $region24: #{generator_forward.1} parent=0 // pred_region
    _
  $region25: #{generator_forward.1} parent=0 // pred_fallthru
    _
  // Predicated region
  $region26: #{generator_forward.1} parent=0 // pred_check
    _
  $region27: #{generator_forward.1} parent=0 // pred_check_branch
    %25 = sbr.rel (0) target = $region29
  $region28: #{generator_forward.1} parent=0 // pred_region
    _
  $region29: #{generator_forward.1} parent=0 // pred_fallthru
    _
  %v26 = vld [vmem:[%s0] sm:$0xff]
  %v27 = vld [vmem:[%s1] sm:$0xff]
  %v28 = vld [vmem:[%s1 + $0x8] sm:$0xff]
  %v29 = vld [vmem:[%s1 + $0x10] sm:$0xff]
  %v30 = vld [vmem:[%s1 + $0x18] sm:$0xff]
  %v31 = vld [vmem:[%s1 + $0x20] sm:$0xff]
  %v32 = vld [vmem:[%s1 + $0x28] sm:$0xff]
  %v33 = vld [vmem:[%s1 + $0x30] sm:$0xff]
  %v34 = vld [vmem:[%s1 + $0x38] sm:$0xff]
  %v35 = vld [vmem:[%s1 + $0x40] sm:$0xff]
  %v36 = vld [vmem:[%s1 + $0x48] sm:$0xff]
  %v37 = vld [vmem:[%s1 + $0x50] sm:$0xff]
  %v38 = vld [vmem:[%s1 + $0x58] sm:$0xff]
  %v39 = vld [vmem:[%s1 + $0x60] sm:$0xff]
  %v40 = vld [vmem:[%s1 + $0x68] sm:$0xff]
  %v41 = vld [vmem:[%s1 + $0x70] sm:$0xff]
  %v42 = vld [vmem:[%s1 + $0x78] sm:$0xff]
  %v43 = vld [vmem:[%s1 + $0x80] sm:$0xff]
  %v44 = vld [vmem:[%s1 + $0x88] sm:$0xff]
  %v45 = vld [vmem:[%s1 + $0x90] sm:$0xff]
  %v46 = vld [vmem:[%s1 + $0x98] sm:$0xff]
  %v47 = vld [vmem:[%s1 + $0xa0] sm:$0xff]
  %v48 = vld [vmem:[%s1 + $0xa8] sm:$0xff]
  %v49 = vld [vmem:[%s1 + $0xb0] sm:$0xff]
  %v50 = vld [vmem:[%s1 + $0xb8] sm:$0xff]
  %v51 = vld [vmem:[%s1 + $0xc0] sm:$0xff]
  %v52 = vld [vmem:[%s1 + $0xc8] sm:$0xff]
  %v53 = vld [vmem:[%s1 + $0xd0] sm:$0xff]
  %v54 = vld [vmem:[%s1 + $0xd8] sm:$0xff]
  %v55 = vld [vmem:[%s1 + $0xe0] sm:$0xff]
  %v56 = vld [vmem:[%s1 + $0xe8] sm:$0xff]
  %v57 = vld [vmem:[%s1 + $0xf0] sm:$0xff]
  %v58 = vld [vmem:[%s1 + $0xf8] sm:$0xff]
  %v59 = vld [vmem:[%s2] sm:$0x3]
  %v61 = vlaneseq
  %v62 = vshrl.u32 %v61, 7
  %v63 = vsub.s32 0, %v62
  %v64 = vrot.slane %v59, %v63
  %v65 = vlaneseq
  %v66 = vshrl.u32 %v65, 7
  %v67 = vsub.s32 1, %v66
  %v68 = vrot.slane %v59, %v67
  %71 = vmatprep.subr.mxu0 %v28
  %72 = vmatpush1.msra.mxu0 %v27
  %73 = vmatprep.subr.mxu0 %v30
  %74 = vmatpush1.msra.mxu0 %v29
  %75 = vmatprep.subr.mxu0 %v32
  %76 = vmatpush1.msra.mxu0 %v31
  %77 = vmatprep.subr.mxu0 %v34
  %78 = vmatpush1.msra.mxu0 %v33
  %79 = vmatprep.subr.mxu0 %v36
  %80 = vmatpush1.msra.mxu0 %v35
  %81 = vmatprep.subr.mxu0 %v38
  %82 = vmatpush1.msra.mxu0 %v37
  %83 = vmatprep.subr.mxu0 %v40
  %84 = vmatpush1.msra.mxu0 %v39
  %85 = vmatprep.subr.mxu0 %v42
  %86 = vmatpush1.msra.mxu0 %v41
  %87 = vmatprep.subr.mxu0 %v44
  %88 = vmatpush1.msra.mxu0 %v43
  %89 = vmatprep.subr.mxu0 %v46
  %90 = vmatpush1.msra.mxu0 %v45
  %91 = vmatprep.subr.mxu0 %v48
  %92 = vmatpush1.msra.mxu0 %v47
  %93 = vmatprep.subr.mxu0 %v50
  %94 = vmatpush1.msra.mxu0 %v49
  %95 = vmatprep.subr.mxu0 %v52
  %96 = vmatpush1.msra.mxu0 %v51
  %97 = vmatprep.subr.mxu0 %v54
  %98 = vmatpush1.msra.mxu0 %v53
  %99 = vmatprep.subr.mxu0 %v56
  %100 = vmatpush1.msra.mxu0 %v55
  %101 = vmatprep.subr.mxu0 %v58
  %102 = vmatpush1.msra.mxu0 %v57
  %103 = vmatprep.subr.mxu0 0.0
  %104 = vmatpush1.msra.mxu0 0.0
  %105 = vmatprep.subr.mxu0 0.0
  %106 = vmatpush1.msra.mxu0 0.0
  %107 = vmatprep.subr.mxu0 0.0
  %108 = vmatpush1.msra.mxu0 0.0
  %109 = vmatprep.subr.mxu0 0.0
  %110 = vmatpush1.msra.mxu0 0.0
  %111 = vmatprep.subr.mxu0 0.0
  %112 = vmatpush1.msra.mxu0 0.0
  %113 = vmatprep.subr.mxu0 0.0
  %114 = vmatpush1.msra.mxu0 0.0
  %115 = vmatprep.subr.mxu0 0.0
  %116 = vmatpush1.msra.mxu0 0.0
  %117 = vmatprep.subr.mxu0 0.0
  %118 = vmatpush1.msra.mxu0 0.0
  %119 = vmatprep.subr.mxu0 0.0
  %120 = vmatpush1.msra.mxu0 0.0
  %121 = vmatprep.subr.mxu0 0.0
  %122 = vmatpush1.msra.mxu0 0.0
  %123 = vmatprep.subr.mxu0 0.0
  %124 = vmatpush1.msra.mxu0 0.0
  %125 = vmatprep.subr.mxu0 0.0
  %126 = vmatpush1.msra.mxu0 0.0
  %127 = vmatprep.subr.mxu0 0.0
  %128 = vmatpush1.msra.mxu0 0.0
  %129 = vmatprep.subr.mxu0 0.0
  %130 = vmatpush1.msra.mxu0 0.0
  %131 = vmatprep.subr.mxu0 0.0
  %132 = vmatpush1.msra.mxu0 0.0
  %133 = vmatprep.subr.mxu0 0.0
  %134 = vmatpush1.msra.mxu0 0.0
  %135 = vmatprep.mubr.f32.mxu0 0.0
  %136 = vmatmul.mubr.f32.gmra.mrb[0].mxu0 %v26
  %v137 = vpop.f32.mrb[0].mxu0
  %v138 = vadd.f32 %v64, %v137
  %v139 = vpop.f32.mrb[0].mxu0
  %v140 = vadd.f32 %v68, %v139
  %141 = vdwg.mxu0
  %v142 = vmul.f32 %v138, 0.2
  %v143 = vmul.f32 %v140, 0.2
  %v144 = vmax.f32 %v138, %v142
  %v145 = vmax.f32 %v140, %v143
  %v146 = vld [vmem:[%s3] sm:$0xff]
  %v147 = vld [vmem:[%s3 + $0x8] sm:$0xff]
  %v148 = vld [vmem:[%s3 + $0x10] sm:$0xff]
  %v149 = vld [vmem:[%s3 + $0x18] sm:$0xff]
  %v150 = vld [vmem:[%s3 + $0x20] sm:$0xff]
  %v151 = vld [vmem:[%s3 + $0x28] sm:$0xff]
  %v152 = vld [vmem:[%s3 + $0x30] sm:$0xff]
  %v153 = vld [vmem:[%s3 + $0x38] sm:$0xff]
  %v154 = vld [vmem:[%s3 + $0x40] sm:$0xff]
  %v155 = vld [vmem:[%s3 + $0x48] sm:$0xff]
  %v156 = vld [vmem:[%s3 + $0x50] sm:$0xff]
  %v157 = vld [vmem:[%s3 + $0x58] sm:$0xff]
  %v158 = vld [vmem:[%s3 + $0x60] sm:$0xff]
  %v159 = vld [vmem:[%s3 + $0x68] sm:$0xff]
  %v160 = vld [vmem:[%s3 + $0x70] sm:$0xff]
  %v161 = vld [vmem:[%s3 + $0x78] sm:$0xff]
  %v162 = vld [vmem:[%s3 + $0x80] sm:$0xff]
  %v163 = vld [vmem:[%s3 + $0x88] sm:$0xff]
  %v164 = vld [vmem:[%s3 + $0x90] sm:$0xff]
  %v165 = vld [vmem:[%s3 + $0x98] sm:$0xff]
  %v166 = vld [vmem:[%s3 + $0xa0] sm:$0xff]
  %v167 = vld [vmem:[%s3 + $0xa8] sm:$0xff]
  %v168 = vld [vmem:[%s3 + $0xb0] sm:$0xff]
  %v169 = vld [vmem:[%s3 + $0xb8] sm:$0xff]
  %v170 = vld [vmem:[%s3 + $0xc0] sm:$0xff]
  %v171 = vld [vmem:[%s3 + $0xc8] sm:$0xff]
  %v172 = vld [vmem:[%s3 + $0xd0] sm:$0xff]
  %v173 = vld [vmem:[%s3 + $0xd8] sm:$0xff]
  %v174 = vld [vmem:[%s3 + $0xe0] sm:$0xff]
  %v175 = vld [vmem:[%s3 + $0xe8] sm:$0xff]
  %v176 = vld [vmem:[%s3 + $0xf0] sm:$0xff]
  %v177 = vld [vmem:[%s3 + $0xf8] sm:$0xff]
  %v178 = vld [vmem:[%s3 + $0x100] sm:$0xff]
  %v179 = vld [vmem:[%s3 + $0x108] sm:$0xff]
  %v180 = vld [vmem:[%s3 + $0x110] sm:$0xff]
  %v181 = vld [vmem:[%s3 + $0x118] sm:$0xff]
  %v182 = vld [vmem:[%s3 + $0x120] sm:$0xff]
  %v183 = vld [vmem:[%s3 + $0x128] sm:$0xff]
  %v184 = vld [vmem:[%s3 + $0x130] sm:$0xff]
  %v185 = vld [vmem:[%s3 + $0x138] sm:$0xff]
  %v186 = vld [vmem:[%s3 + $0x140] sm:$0xff]
  %v187 = vld [vmem:[%s3 + $0x148] sm:$0xff]
  %v188 = vld [vmem:[%s3 + $0x150] sm:$0xff]
  %v189 = vld [vmem:[%s3 + $0x158] sm:$0xff]
  %v190 = vld [vmem:[%s3 + $0x160] sm:$0xff]
  %v191 = vld [vmem:[%s3 + $0x168] sm:$0xff]
  %v192 = vld [vmem:[%s3 + $0x170] sm:$0xff]
  %v193 = vld [vmem:[%s3 + $0x178] sm:$0xff]
  %v194 = vld [vmem:[%s3 + $0x180] sm:$0xff]
  %v195 = vld [vmem:[%s3 + $0x188] sm:$0xff]
  %v196 = vld [vmem:[%s3 + $0x190] sm:$0xff]
  %v197 = vld [vmem:[%s3 + $0x198] sm:$0xff]
  %v198 = vld [vmem:[%s3 + $0x1a0] sm:$0xff]
  %v199 = vld [vmem:[%s3 + $0x1a8] sm:$0xff]
  %v200 = vld [vmem:[%s3 + $0x1b0] sm:$0xff]
  %v201 = vld [vmem:[%s3 + $0x1b8] sm:$0xff]
  %v202 = vld [vmem:[%s3 + $0x1c0] sm:$0xff]
  %v203 = vld [vmem:[%s3 + $0x1c8] sm:$0xff]
  %v204 = vld [vmem:[%s3 + $0x1d0] sm:$0xff]
  %v205 = vld [vmem:[%s3 + $0x1d8] sm:$0xff]
  %v206 = vld [vmem:[%s3 + $0x1e0] sm:$0xff]
  %v207 = vld [vmem:[%s3 + $0x1e8] sm:$0xff]
  %v208 = vld [vmem:[%s3 + $0x1f0] sm:$0xff]
  %v209 = vld [vmem:[%s3 + $0x1f8] sm:$0xff]
  %v210 = vld [vmem:[%s4] sm:$0x3]
  %v212 = vlaneseq
  %v213 = vshrl.u32 %v212, 7
  %v214 = vsub.s32 0, %v213
  %v215 = vrot.slane %v210, %v214
  %v216 = vlaneseq
  %v217 = vshrl.u32 %v216, 7
  %v218 = vsub.s32 1, %v217
  %v219 = vrot.slane %v210, %v218
  %222 = vmatprep.subr.mxu0 %v147
  %223 = vmatpush1.msra.mxu0 %v146
  %224 = vmatprep.subr.mxu0 %v149
  %225 = vmatpush1.msra.mxu0 %v148
  %226 = vmatprep.subr.mxu0 %v151
  %227 = vmatpush1.msra.mxu0 %v150
  %228 = vmatprep.subr.mxu0 %v153
  %229 = vmatpush1.msra.mxu0 %v152
  %230 = vmatprep.subr.mxu0 %v155
  %231 = vmatpush1.msra.mxu0 %v154
  %232 = vmatprep.subr.mxu0 %v157
  %233 = vmatpush1.msra.mxu0 %v156
  %234 = vmatprep.subr.mxu0 %v159
  %235 = vmatpush1.msra.mxu0 %v158
  %236 = vmatprep.subr.mxu0 %v161
  %237 = vmatpush1.msra.mxu0 %v160
  %238 = vmatprep.subr.mxu0 %v163
  %239 = vmatpush1.msra.mxu0 %v162
  %240 = vmatprep.subr.mxu0 %v165
  %241 = vmatpush1.msra.mxu0 %v164
  %242 = vmatprep.subr.mxu0 %v167
  %243 = vmatpush1.msra.mxu0 %v166
  %244 = vmatprep.subr.mxu0 %v169
  %245 = vmatpush1.msra.mxu0 %v168
  %246 = vmatprep.subr.mxu0 %v171
  %247 = vmatpush1.msra.mxu0 %v170
  %248 = vmatprep.subr.mxu0 %v173
  %249 = vmatpush1.msra.mxu0 %v172
  %250 = vmatprep.subr.mxu0 %v175
  %251 = vmatpush1.msra.mxu0 %v174
  %252 = vmatprep.subr.mxu0 %v177
  %253 = vmatpush1.msra.mxu0 %v176
  %254 = vmatprep.subr.mxu0 %v179
  %255 = vmatpush1.msra.mxu0 %v178
  %256 = vmatprep.subr.mxu0 %v181
  %257 = vmatpush1.msra.mxu0 %v180
  %258 = vmatprep.subr.mxu0 %v183
  %259 = vmatpush1.msra.mxu0 %v182
  %260 = vmatprep.subr.mxu0 %v185
  %261 = vmatpush1.msra.mxu0 %v184
  %262 = vmatprep.subr.mxu0 %v187
  %263 = vmatpush1.msra.mxu0 %v186
  %264 = vmatprep.subr.mxu0 %v189
  %265 = vmatpush1.msra.mxu0 %v188
  %266 = vmatprep.subr.mxu0 %v191
  %267 = vmatpush1.msra.mxu0 %v190
  %268 = vmatprep.subr.mxu0 %v193
  %269 = vmatpush1.msra.mxu0 %v192
  %270 = vmatprep.subr.mxu0 %v195
  %271 = vmatpush1.msra.mxu0 %v194
  %272 = vmatprep.subr.mxu0 %v197
  %273 = vmatpush1.msra.mxu0 %v196
  %274 = vmatprep.subr.mxu0 %v199
  %275 = vmatpush1.msra.mxu0 %v198
  %276 = vmatprep.subr.mxu0 %v201
  %277 = vmatpush1.msra.mxu0 %v200
  %278 = vmatprep.subr.mxu0 %v203
  %279 = vmatpush1.msra.mxu0 %v202
  %280 = vmatprep.subr.mxu0 %v205
  %281 = vmatpush1.msra.mxu0 %v204
  %282 = vmatprep.subr.mxu0 %v207
  %283 = vmatpush1.msra.mxu0 %v206
  %284 = vmatprep.subr.mxu0 %v209
  %285 = vmatpush1.msra.mxu0 %v208
  %286 = vmatprep.mubr.f32.mxu0 %v145
  %287 = vmatmul.mubr.f32.gmra.mrb[0].mxu0 %v144
  %v288 = vpop.f32.mrb[0].mxu0
  %v289 = vadd.f32 %v215, %v288
  %v290 = vpop.f32.mrb[0].mxu0
  %v291 = vadd.f32 %v219, %v290
  %292 = vdwg.mxu0
  %v293 = vmul.f32 %v289, 0.2
  %v294 = vmul.f32 %v291, 0.2
  %v295 = vmax.f32 %v289, %v293
  %v296 = vmax.f32 %v291, %v294
  %v297 = vld [vmem:[%s5] sm:$0xff]
  %v298 = vld [vmem:[%s5 + $0x8] sm:$0xff]
  %v299 = vld [vmem:[%s5 + $0x10] sm:$0xff]
  %v300 = vld [vmem:[%s5 + $0x18] sm:$0xff]
  %v301 = vld [vmem:[%s5 + $0x20] sm:$0xff]
  %v302 = vld [vmem:[%s5 + $0x28] sm:$0xff]
  %v303 = vld [vmem:[%s5 + $0x30] sm:$0xff]
  %v304 = vld [vmem:[%s5 + $0x38] sm:$0xff]
  %v305 = vld [vmem:[%s5 + $0x40] sm:$0xff]
  %v306 = vld [vmem:[%s5 + $0x48] sm:$0xff]
  %v307 = vld [vmem:[%s5 + $0x50] sm:$0xff]
  %v308 = vld [vmem:[%s5 + $0x58] sm:$0xff]
  %v309 = vld [vmem:[%s5 + $0x60] sm:$0xff]
  %v310 = vld [vmem:[%s5 + $0x68] sm:$0xff]
  %v311 = vld [vmem:[%s5 + $0x70] sm:$0xff]
  %v312 = vld [vmem:[%s5 + $0x78] sm:$0xff]
  %v313 = vld [vmem:[%s5 + $0x80] sm:$0xff]
  %v314 = vld [vmem:[%s5 + $0x88] sm:$0xff]
  %v315 = vld [vmem:[%s5 + $0x90] sm:$0xff]
  %v316 = vld [vmem:[%s5 + $0x98] sm:$0xff]
  %v317 = vld [vmem:[%s5 + $0xa0] sm:$0xff]
  %v318 = vld [vmem:[%s5 + $0xa8] sm:$0xff]
  %v319 = vld [vmem:[%s5 + $0xb0] sm:$0xff]
  %v320 = vld [vmem:[%s5 + $0xb8] sm:$0xff]
  %v321 = vld [vmem:[%s5 + $0xc0] sm:$0xff]
  %v322 = vld [vmem:[%s5 + $0xc8] sm:$0xff]
  %v323 = vld [vmem:[%s5 + $0xd0] sm:$0xff]
  %v324 = vld [vmem:[%s5 + $0xd8] sm:$0xff]
  %v325 = vld [vmem:[%s5 + $0xe0] sm:$0xff]
  %v326 = vld [vmem:[%s5 + $0xe8] sm:$0xff]
  %v327 = vld [vmem:[%s5 + $0xf0] sm:$0xff]
  %v328 = vld [vmem:[%s5 + $0xf8] sm:$0xff]
  %v329 = vld [vmem:[%s5 + $0x100] sm:$0xff]
  %v330 = vld [vmem:[%s5 + $0x108] sm:$0xff]
  %v331 = vld [vmem:[%s5 + $0x110] sm:$0xff]
  %v332 = vld [vmem:[%s5 + $0x118] sm:$0xff]
  %v333 = vld [vmem:[%s5 + $0x120] sm:$0xff]
  %v334 = vld [vmem:[%s5 + $0x128] sm:$0xff]
  %v335 = vld [vmem:[%s5 + $0x130] sm:$0xff]
  %v336 = vld [vmem:[%s5 + $0x138] sm:$0xff]
  %v337 = vld [vmem:[%s5 + $0x140] sm:$0xff]
  %v338 = vld [vmem:[%s5 + $0x148] sm:$0xff]
  %v339 = vld [vmem:[%s5 + $0x150] sm:$0xff]
  %v340 = vld [vmem:[%s5 + $0x158] sm:$0xff]
  %v341 = vld [vmem:[%s5 + $0x160] sm:$0xff]
  %v342 = vld [vmem:[%s5 + $0x168] sm:$0xff]
  %v343 = vld [vmem:[%s5 + $0x170] sm:$0xff]
  %v344 = vld [vmem:[%s5 + $0x178] sm:$0xff]
  %v345 = vld [vmem:[%s5 + $0x180] sm:$0xff]
  %v346 = vld [vmem:[%s5 + $0x188] sm:$0xff]
  %v347 = vld [vmem:[%s5 + $0x190] sm:$0xff]
  %v348 = vld [vmem:[%s5 + $0x198] sm:$0xff]
  %v349 = vld [vmem:[%s5 + $0x1a0] sm:$0xff]
  %v350 = vld [vmem:[%s5 + $0x1a8] sm:$0xff]
  %v351 = vld [vmem:[%s5 + $0x1b0] sm:$0xff]
  %v352 = vld [vmem:[%s5 + $0x1b8] sm:$0xff]
  %v353 = vld [vmem:[%s5 + $0x1c0] sm:$0xff]
  %v354 = vld [vmem:[%s5 + $0x1c8] sm:$0xff]
  %v355 = vld [vmem:[%s5 + $0x1d0] sm:$0xff]
  %v356 = vld [vmem:[%s5 + $0x1d8] sm:$0xff]
  %v357 = vld [vmem:[%s5 + $0x1e0] sm:$0xff]
  %v358 = vld [vmem:[%s5 + $0x1e8] sm:$0xff]
  %v359 = vld [vmem:[%s5 + $0x1f0] sm:$0xff]
  %v360 = vld [vmem:[%s5 + $0x1f8] sm:$0xff]
  %v361 = vld [vmem:[%s5 + $0x200] sm:$0xff]
  %v362 = vld [vmem:[%s5 + $0x208] sm:$0xff]
  %v363 = vld [vmem:[%s5 + $0x210] sm:$0xff]
  %v364 = vld [vmem:[%s5 + $0x218] sm:$0xff]
  %v365 = vld [vmem:[%s5 + $0x220] sm:$0xff]
  %v366 = vld [vmem:[%s5 + $0x228] sm:$0xff]
  %v367 = vld [vmem:[%s5 + $0x230] sm:$0xff]
  %v368 = vld [vmem:[%s5 + $0x238] sm:$0xff]
  %v369 = vld [vmem:[%s5 + $0x240] sm:$0xff]
  %v370 = vld [vmem:[%s5 + $0x248] sm:$0xff]
  %v371 = vld [vmem:[%s5 + $0x250] sm:$0xff]
  %v372 = vld [vmem:[%s5 + $0x258] sm:$0xff]
  %v373 = vld [vmem:[%s5 + $0x260] sm:$0xff]
  %v374 = vld [vmem:[%s5 + $0x268] sm:$0xff]
  %v375 = vld [vmem:[%s5 + $0x270] sm:$0xff]
  %v376 = vld [vmem:[%s5 + $0x278] sm:$0xff]
  %v377 = vld [vmem:[%s5 + $0x280] sm:$0xff]
  %v378 = vld [vmem:[%s5 + $0x288] sm:$0xff]
  %v379 = vld [vmem:[%s5 + $0x290] sm:$0xff]
  %v380 = vld [vmem:[%s5 + $0x298] sm:$0xff]
  %v381 = vld [vmem:[%s5 + $0x2a0] sm:$0xff]
  %v382 = vld [vmem:[%s5 + $0x2a8] sm:$0xff]
  %v383 = vld [vmem:[%s5 + $0x2b0] sm:$0xff]
  %v384 = vld [vmem:[%s5 + $0x2b8] sm:$0xff]
  %v385 = vld [vmem:[%s5 + $0x2c0] sm:$0xff]
  %v386 = vld [vmem:[%s5 + $0x2c8] sm:$0xff]
  %v387 = vld [vmem:[%s5 + $0x2d0] sm:$0xff]
  %v388 = vld [vmem:[%s5 + $0x2d8] sm:$0xff]
  %v389 = vld [vmem:[%s5 + $0x2e0] sm:$0xff]
  %v390 = vld [vmem:[%s5 + $0x2e8] sm:$0xff]
  %v391 = vld [vmem:[%s5 + $0x2f0] sm:$0xff]
  %v392 = vld [vmem:[%s5 + $0x2f8] sm:$0xff]
  %v393 = vld [vmem:[%s5 + $0x300] sm:$0xff]
  %v394 = vld [vmem:[%s5 + $0x308] sm:$0xff]
  %v395 = vld [vmem:[%s5 + $0x310] sm:$0xff]
  %v396 = vld [vmem:[%s5 + $0x318] sm:$0xff]
  %v397 = vld [vmem:[%s5 + $0x320] sm:$0xff]
  %v398 = vld [vmem:[%s5 + $0x328] sm:$0xff]
  %v399 = vld [vmem:[%s5 + $0x330] sm:$0xff]
  %v400 = vld [vmem:[%s5 + $0x338] sm:$0xff]
  %v401 = vld [vmem:[%s5 + $0x340] sm:$0xff]
  %v402 = vld [vmem:[%s5 + $0x348] sm:$0xff]
  %v403 = vld [vmem:[%s5 + $0x350] sm:$0xff]
  %v404 = vld [vmem:[%s5 + $0x358] sm:$0xff]
  %v405 = vld [vmem:[%s5 + $0x360] sm:$0xff]
  %v406 = vld [vmem:[%s5 + $0x368] sm:$0xff]
  %v407 = vld [vmem:[%s5 + $0x370] sm:$0xff]
  %v408 = vld [vmem:[%s5 + $0x378] sm:$0xff]
  %v409 = vld [vmem:[%s5 + $0x380] sm:$0xff]
  %v410 = vld [vmem:[%s5 + $0x388] sm:$0xff]
  %v411 = vld [vmem:[%s5 + $0x390] sm:$0xff]
  %v412 = vld [vmem:[%s5 + $0x398] sm:$0xff]
  %v413 = vld [vmem:[%s5 + $0x3a0] sm:$0xff]
  %v414 = vld [vmem:[%s5 + $0x3a8] sm:$0xff]
  %v415 = vld [vmem:[%s5 + $0x3b0] sm:$0xff]
  %v416 = vld [vmem:[%s5 + $0x3b8] sm:$0xff]
  %v417 = vld [vmem:[%s5 + $0x3c0] sm:$0xff]
  %v418 = vld [vmem:[%s5 + $0x3c8] sm:$0xff]
  %v419 = vld [vmem:[%s5 + $0x3d0] sm:$0xff]
  %v420 = vld [vmem:[%s5 + $0x3d8] sm:$0xff]
  %v421 = vld [vmem:[%s5 + $0x3e0] sm:$0xff]
  %v422 = vld [vmem:[%s5 + $0x3e8] sm:$0xff]
  %v423 = vld [vmem:[%s5 + $0x3f0] sm:$0xff]
  %v424 = vld [vmem:[%s5 + $0x3f8] sm:$0xff]
  %v425 = vld [vmem:[%s5 + $0x400] sm:$0xff]
  %v426 = vld [vmem:[%s5 + $0x408] sm:$0xff]
  %v427 = vld [vmem:[%s5 + $0x410] sm:$0xff]
  %v428 = vld [vmem:[%s5 + $0x418] sm:$0xff]
  %v429 = vld [vmem:[%s5 + $0x420] sm:$0xff]
  %v430 = vld [vmem:[%s5 + $0x428] sm:$0xff]
  %v431 = vld [vmem:[%s5 + $0x430] sm:$0xff]
  %v432 = vld [vmem:[%s5 + $0x438] sm:$0xff]
  %v433 = vld [vmem:[%s5 + $0x440] sm:$0xff]
  %v434 = vld [vmem:[%s5 + $0x448] sm:$0xff]
  %v435 = vld [vmem:[%s5 + $0x450] sm:$0xff]
  %v436 = vld [vmem:[%s5 + $0x458] sm:$0xff]
  %v437 = vld [vmem:[%s5 + $0x460] sm:$0xff]
  %v438 = vld [vmem:[%s5 + $0x468] sm:$0xff]
  %v439 = vld [vmem:[%s5 + $0x470] sm:$0xff]
  %v440 = vld [vmem:[%s5 + $0x478] sm:$0xff]
  %v441 = vld [vmem:[%s5 + $0x480] sm:$0xff]
  %v442 = vld [vmem:[%s5 + $0x488] sm:$0xff]
  %v443 = vld [vmem:[%s5 + $0x490] sm:$0xff]
  %v444 = vld [vmem:[%s5 + $0x498] sm:$0xff]
  %v445 = vld [vmem:[%s5 + $0x4a0] sm:$0xff]
  %v446 = vld [vmem:[%s5 + $0x4a8] sm:$0xff]
  %v447 = vld [vmem:[%s5 + $0x4b0] sm:$0xff]
  %v448 = vld [vmem:[%s5 + $0x4b8] sm:$0xff]
  %v449 = vld [vmem:[%s5 + $0x4c0] sm:$0xff]
  %v450 = vld [vmem:[%s5 + $0x4c8] sm:$0xff]
  %v451 = vld [vmem:[%s5 + $0x4d0] sm:$0xff]
  %v452 = vld [vmem:[%s5 + $0x4d8] sm:$0xff]
  %v453 = vld [vmem:[%s5 + $0x4e0] sm:$0xff]
  %v454 = vld [vmem:[%s5 + $0x4e8] sm:$0xff]
  %v455 = vld [vmem:[%s5 + $0x4f0] sm:$0xff]
  %v456 = vld [vmem:[%s5 + $0x4f8] sm:$0xff]
  %v457 = vld [vmem:[%s5 + $0x500] sm:$0xff]
  %v458 = vld [vmem:[%s5 + $0x508] sm:$0xff]
  %v459 = vld [vmem:[%s5 + $0x510] sm:$0xff]
  %v460 = vld [vmem:[%s5 + $0x518] sm:$0xff]
  %v461 = vld [vmem:[%s5 + $0x520] sm:$0xff]
  %v462 = vld [vmem:[%s5 + $0x528] sm:$0xff]
  %v463 = vld [vmem:[%s5 + $0x530] sm:$0xff]
  %v464 = vld [vmem:[%s5 + $0x538] sm:$0xff]
  %v465 = vld [vmem:[%s5 + $0x540] sm:$0xff]
  %v466 = vld [vmem:[%s5 + $0x548] sm:$0xff]
  %v467 = vld [vmem:[%s5 + $0x550] sm:$0xff]
  %v468 = vld [vmem:[%s5 + $0x558] sm:$0xff]
  %v469 = vld [vmem:[%s5 + $0x560] sm:$0xff]
  %v470 = vld [vmem:[%s5 + $0x568] sm:$0xff]
  %v471 = vld [vmem:[%s5 + $0x570] sm:$0xff]
  %v472 = vld [vmem:[%s5 + $0x578] sm:$0xff]
  %v473 = vld [vmem:[%s5 + $0x580] sm:$0xff]
  %v474 = vld [vmem:[%s5 + $0x588] sm:$0xff]
  %v475 = vld [vmem:[%s5 + $0x590] sm:$0xff]
  %v476 = vld [vmem:[%s5 + $0x598] sm:$0xff]
  %v477 = vld [vmem:[%s5 + $0x5a0] sm:$0xff]
  %v478 = vld [vmem:[%s5 + $0x5a8] sm:$0xff]
  %v479 = vld [vmem:[%s5 + $0x5b0] sm:$0xff]
  %v480 = vld [vmem:[%s5 + $0x5b8] sm:$0xff]
  %v481 = vld [vmem:[%s5 + $0x5c0] sm:$0xff]
  %v482 = vld [vmem:[%s5 + $0x5c8] sm:$0xff]
  %v483 = vld [vmem:[%s5 + $0x5d0] sm:$0xff]
  %v484 = vld [vmem:[%s5 + $0x5d8] sm:$0xff]
  %v485 = vld [vmem:[%s5 + $0x5e0] sm:$0xff]
  %v486 = vld [vmem:[%s5 + $0x5e8] sm:$0xff]
  %v487 = vld [vmem:[%s5 + $0x5f0] sm:$0xff]
  %v488 = vld [vmem:[%s5 + $0x5f8] sm:$0xff]
  %v489 = vld [vmem:[%s5 + $0x600] sm:$0xff]
  %v490 = vld [vmem:[%s5 + $0x608] sm:$0xff]
  %v491 = vld [vmem:[%s5 + $0x610] sm:$0xff]
  %v492 = vld [vmem:[%s5 + $0x618] sm:$0xff]
  %v493 = vld [vmem:[%s5 + $0x620] sm:$0xff]
  %v494 = vld [vmem:[%s5 + $0x628] sm:$0xff]
  %v495 = vld [vmem:[%s5 + $0x630] sm:$0xff]
  %v496 = vld [vmem:[%s5 + $0x638] sm:$0xff]
  %v497 = vld [vmem:[%s5 + $0x640] sm:$0xff]
  %v498 = vld [vmem:[%s5 + $0x648] sm:$0xff]
  %v499 = vld [vmem:[%s5 + $0x650] sm:$0xff]
  %v500 = vld [vmem:[%s5 + $0x658] sm:$0xff]
  %v501 = vld [vmem:[%s5 + $0x660] sm:$0xff]
  %v502 = vld [vmem:[%s5 + $0x668] sm:$0xff]
  %v503 = vld [vmem:[%s5 + $0x670] sm:$0xff]
  %v504 = vld [vmem:[%s5 + $0x678] sm:$0xff]
  %v505 = vld [vmem:[%s5 + $0x680] sm:$0xff]
  %v506 = vld [vmem:[%s5 + $0x688] sm:$0xff]
  %v507 = vld [vmem:[%s5 + $0x690] sm:$0xff]
  %v508 = vld [vmem:[%s5 + $0x698] sm:$0xff]
  %v509 = vld [vmem:[%s5 + $0x6a0] sm:$0xff]
  %v510 = vld [vmem:[%s5 + $0x6a8] sm:$0xff]
  %v511 = vld [vmem:[%s5 + $0x6b0] sm:$0xff]
  %v512 = vld [vmem:[%s5 + $0x6b8] sm:$0xff]
  %v513 = vld [vmem:[%s5 + $0x6c0] sm:$0xff]
  %v514 = vld [vmem:[%s5 + $0x6c8] sm:$0xff]
  %v515 = vld [vmem:[%s5 + $0x6d0] sm:$0xff]
  %v516 = vld [vmem:[%s5 + $0x6d8] sm:$0xff]
  %v517 = vld [vmem:[%s5 + $0x6e0] sm:$0xff]
  %v518 = vld [vmem:[%s5 + $0x6e8] sm:$0xff]
  %v519 = vld [vmem:[%s5 + $0x6f0] sm:$0xff]
  %v520 = vld [vmem:[%s5 + $0x6f8] sm:$0xff]
  %v521 = vld [vmem:[%s6] sm:$0xff]
  %v523 = vlaneseq
  %v524 = vshrl.u32 %v523, 7
  %v525 = vsub.s32 0, %v524
  %v526 = vrot.slane %v521, %v525
  %v527 = vlaneseq
  %v528 = vshrl.u32 %v527, 7
  %v529 = vsub.s32 1, %v528
  %v530 = vrot.slane %v521, %v529
  %v531 = vlaneseq
  %v532 = vshrl.u32 %v531, 7
  %v533 = vsub.s32 2, %v532
  %v534 = vrot.slane %v521, %v533
  %v535 = vlaneseq
  %v536 = vshrl.u32 %v535, 7
  %v537 = vsub.s32 3, %v536
  %v538 = vrot.slane %v521, %v537
  %v539 = vlaneseq
  %v540 = vshrl.u32 %v539, 7
  %v541 = vsub.s32 4, %v540
  %v542 = vrot.slane %v521, %v541
  %v543 = vlaneseq
  %v544 = vshrl.u32 %v543, 7
  %v545 = vsub.s32 5, %v544
  %v546 = vrot.slane %v521, %v545
  %v547 = vlaneseq
  %v548 = vshrl.u32 %v547, 7
  %v549 = vsub.s32 6, %v548
  %v550 = vrot.slane %v521, %v549
  %558 = vmatprep.subr.mxu0 %v298
  %559 = vmatpush1.msra.mxu0 %v297
  %560 = vmatprep.subr.mxu0 %v305
  %561 = vmatpush1.msra.mxu0 %v304
  %562 = vmatprep.subr.mxu0 %v312
  %563 = vmatpush1.msra.mxu0 %v311
  %564 = vmatprep.subr.mxu0 %v319
  %565 = vmatpush1.msra.mxu0 %v318
  %566 = vmatprep.subr.mxu0 %v326
  %567 = vmatpush1.msra.mxu0 %v325
  %568 = vmatprep.subr.mxu0 %v333
  %569 = vmatpush1.msra.mxu0 %v332
  %570 = vmatprep.subr.mxu0 %v340
  %571 = vmatpush1.msra.mxu0 %v339
  %572 = vmatprep.subr.mxu0 %v347
  %573 = vmatpush1.msra.mxu0 %v346
  %574 = vmatprep.subr.mxu0 %v354
  %575 = vmatpush1.msra.mxu0 %v353
  %576 = vmatprep.subr.mxu0 %v361
  %577 = vmatpush1.msra.mxu0 %v360
  %578 = vmatprep.subr.mxu0 %v368
  %579 = vmatpush1.msra.mxu0 %v367
  %580 = vmatprep.subr.mxu0 %v375
  %581 = vmatpush1.msra.mxu0 %v374
  %582 = vmatprep.subr.mxu0 %v382
  %583 = vmatpush1.msra.mxu0 %v381
  %584 = vmatprep.subr.mxu0 %v389
  %585 = vmatpush1.msra.mxu0 %v388
  %586 = vmatprep.subr.mxu0 %v396
  %587 = vmatpush1.msra.mxu0 %v395
  %588 = vmatprep.subr.mxu0 %v403
  %589 = vmatpush1.msra.mxu0 %v402
  %590 = vmatprep.subr.mxu0 %v410
  %591 = vmatpush1.msra.mxu0 %v409
  %592 = vmatprep.subr.mxu0 %v417
  %593 = vmatpush1.msra.mxu0 %v416
  %594 = vmatprep.subr.mxu0 %v424
  %595 = vmatpush1.msra.mxu0 %v423
  %596 = vmatprep.subr.mxu0 %v431
  %597 = vmatpush1.msra.mxu0 %v430
  %598 = vmatprep.subr.mxu0 %v438
  %599 = vmatpush1.msra.mxu0 %v437
  %600 = vmatprep.subr.mxu0 %v445
  %601 = vmatpush1.msra.mxu0 %v444
  %602 = vmatprep.subr.mxu0 %v452
  %603 = vmatpush1.msra.mxu0 %v451
  %604 = vmatprep.subr.mxu0 %v459
  %605 = vmatpush1.msra.mxu0 %v458
  %606 = vmatprep.subr.mxu0 %v466
  %607 = vmatpush1.msra.mxu0 %v465
  %608 = vmatprep.subr.mxu0 %v473
  %609 = vmatpush1.msra.mxu0 %v472
  %610 = vmatprep.subr.mxu0 %v480
  %611 = vmatpush1.msra.mxu0 %v479
  %612 = vmatprep.subr.mxu0 %v487
  %613 = vmatpush1.msra.mxu0 %v486
  %614 = vmatprep.subr.mxu0 %v494
  %615 = vmatpush1.msra.mxu0 %v493
  %616 = vmatprep.subr.mxu0 %v501
  %617 = vmatpush1.msra.mxu0 %v500
  %618 = vmatprep.subr.mxu0 %v508
  %619 = vmatpush1.msra.mxu0 %v507
  %620 = vmatprep.subr.mxu0 %v515
  %621 = vmatpush1.msra.mxu0 %v514
  %622 = vmatprep.mubr.f32.mxu0 %v296
  %623 = vmatmul.mubr.f32.gmra.mrb[0].mxu0 %v295
  %v624 = vpop.f32.mrb[0].mxu0
  %v625 = vadd.f32 %v526, %v624
  %v626 = vpop.f32.mrb[0].mxu0
  %v627 = vadd.f32 %v530, %v626
  %628 = vdwg.mxu0
  %629 = vmatprep.subr.mxu0 %v300
  %630 = vmatpush1.msra.mxu0 %v299
  %631 = vmatprep.subr.mxu0 %v307
  %632 = vmatpush1.msra.mxu0 %v306
  %633 = vmatprep.subr.mxu0 %v314
  %634 = vmatpush1.msra.mxu0 %v313
  %635 = vmatprep.subr.mxu0 %v321
  %636 = vmatpush1.msra.mxu0 %v320
  %637 = vmatprep.subr.mxu0 %v328
  %638 = vmatpush1.msra.mxu0 %v327
  %639 = vmatprep.subr.mxu0 %v335
  %640 = vmatpush1.msra.mxu0 %v334
  %641 = vmatprep.subr.mxu0 %v342
  %642 = vmatpush1.msra.mxu0 %v341
  %643 = vmatprep.subr.mxu0 %v349
  %644 = vmatpush1.msra.mxu0 %v348
  %645 = vmatprep.subr.mxu0 %v356
  %646 = vmatpush1.msra.mxu0 %v355
  %647 = vmatprep.subr.mxu0 %v363
  %648 = vmatpush1.msra.mxu0 %v362
  %649 = vmatprep.subr.mxu0 %v370
  %650 = vmatpush1.msra.mxu0 %v369
  %651 = vmatprep.subr.mxu0 %v377
  %652 = vmatpush1.msra.mxu0 %v376
  %653 = vmatprep.subr.mxu0 %v384
  %654 = vmatpush1.msra.mxu0 %v383
  %655 = vmatprep.subr.mxu0 %v391
  %656 = vmatpush1.msra.mxu0 %v390
  %657 = vmatprep.subr.mxu0 %v398
  %658 = vmatpush1.msra.mxu0 %v397
  %659 = vmatprep.subr.mxu0 %v405
  %660 = vmatpush1.msra.mxu0 %v404
  %661 = vmatprep.subr.mxu0 %v412
  %662 = vmatpush1.msra.mxu0 %v411
  %663 = vmatprep.subr.mxu0 %v419
  %664 = vmatpush1.msra.mxu0 %v418
  %665 = vmatprep.subr.mxu0 %v426
  %666 = vmatpush1.msra.mxu0 %v425
  %667 = vmatprep.subr.mxu0 %v433
  %668 = vmatpush1.msra.mxu0 %v432
  %669 = vmatprep.subr.mxu0 %v440
  %670 = vmatpush1.msra.mxu0 %v439
  %671 = vmatprep.subr.mxu0 %v447
  %672 = vmatpush1.msra.mxu0 %v446
  %673 = vmatprep.subr.mxu0 %v454
  %674 = vmatpush1.msra.mxu0 %v453
  %675 = vmatprep.subr.mxu0 %v461
  %676 = vmatpush1.msra.mxu0 %v460
  %677 = vmatprep.subr.mxu0 %v468
  %678 = vmatpush1.msra.mxu0 %v467
  %679 = vmatprep.subr.mxu0 %v475
  %680 = vmatpush1.msra.mxu0 %v474
  %681 = vmatprep.subr.mxu0 %v482
  %682 = vmatpush1.msra.mxu0 %v481
  %683 = vmatprep.subr.mxu0 %v489
  %684 = vmatpush1.msra.mxu0 %v488
  %685 = vmatprep.subr.mxu0 %v496
  %686 = vmatpush1.msra.mxu0 %v495
  %687 = vmatprep.subr.mxu0 %v503
  %688 = vmatpush1.msra.mxu0 %v502
  %689 = vmatprep.subr.mxu0 %v510
  %690 = vmatpush1.msra.mxu0 %v509
  %691 = vmatprep.subr.mxu0 %v517
  %692 = vmatpush1.msra.mxu0 %v516
  %693 = vmatprep.mubr.f32.mxu0 %v296
  %694 = vmatmul.mubr.f32.gmra.mrb[0].mxu0 %v295
  %v695 = vpop.f32.mrb[0].mxu0
  %v696 = vadd.f32 %v534, %v695
  %v697 = vpop.f32.mrb[0].mxu0
  %v698 = vadd.f32 %v538, %v697
  %699 = vdwg.mxu0
  %700 = vmatprep.subr.mxu0 %v302
  %701 = vmatpush1.msra.mxu0 %v301
  %702 = vmatprep.subr.mxu0 %v309
  %703 = vmatpush1.msra.mxu0 %v308
  %704 = vmatprep.subr.mxu0 %v316
  %705 = vmatpush1.msra.mxu0 %v315
  %706 = vmatprep.subr.mxu0 %v323
  %707 = vmatpush1.msra.mxu0 %v322
  %708 = vmatprep.subr.mxu0 %v330
  %709 = vmatpush1.msra.mxu0 %v329
  %710 = vmatprep.subr.mxu0 %v337
  %711 = vmatpush1.msra.mxu0 %v336
  %712 = vmatprep.subr.mxu0 %v344
  %713 = vmatpush1.msra.mxu0 %v343
  %714 = vmatprep.subr.mxu0 %v351
  %715 = vmatpush1.msra.mxu0 %v350
  %716 = vmatprep.subr.mxu0 %v358
  %717 = vmatpush1.msra.mxu0 %v357
  %718 = vmatprep.subr.mxu0 %v365
  %719 = vmatpush1.msra.mxu0 %v364
  %720 = vmatprep.subr.mxu0 %v372
  %721 = vmatpush1.msra.mxu0 %v371
  %722 = vmatprep.subr.mxu0 %v379
  %723 = vmatpush1.msra.mxu0 %v378
  %724 = vmatprep.subr.mxu0 %v386
  %725 = vmatpush1.msra.mxu0 %v385
  %726 = vmatprep.subr.mxu0 %v393
  %727 = vmatpush1.msra.mxu0 %v392
  %728 = vmatprep.subr.mxu0 %v400
  %729 = vmatpush1.msra.mxu0 %v399
  %730 = vmatprep.subr.mxu0 %v407
  %731 = vmatpush1.msra.mxu0 %v406
  %732 = vmatprep.subr.mxu0 %v414
  %733 = vmatpush1.msra.mxu0 %v413
  %734 = vmatprep.subr.mxu0 %v421
  %735 = vmatpush1.msra.mxu0 %v420
  %736 = vmatprep.subr.mxu0 %v428
  %737 = vmatpush1.msra.mxu0 %v427
  %738 = vmatprep.subr.mxu0 %v435
  %739 = vmatpush1.msra.mxu0 %v434
  %740 = vmatprep.subr.mxu0 %v442
  %741 = vmatpush1.msra.mxu0 %v441
  %742 = vmatprep.subr.mxu0 %v449
  %743 = vmatpush1.msra.mxu0 %v448
  %744 = vmatprep.subr.mxu0 %v456
  %745 = vmatpush1.msra.mxu0 %v455
  %746 = vmatprep.subr.mxu0 %v463
  %747 = vmatpush1.msra.mxu0 %v462
  %748 = vmatprep.subr.mxu0 %v470
  %749 = vmatpush1.msra.mxu0 %v469
  %750 = vmatprep.subr.mxu0 %v477
  %751 = vmatpush1.msra.mxu0 %v476
  %752 = vmatprep.subr.mxu0 %v484
  %753 = vmatpush1.msra.mxu0 %v483
  %754 = vmatprep.subr.mxu0 %v491
  %755 = vmatpush1.msra.mxu0 %v490
  %756 = vmatprep.subr.mxu0 %v498
  %757 = vmatpush1.msra.mxu0 %v497
  %758 = vmatprep.subr.mxu0 %v505
  %759 = vmatpush1.msra.mxu0 %v504
  %760 = vmatprep.subr.mxu0 %v512
  %761 = vmatpush1.msra.mxu0 %v511
  %762 = vmatprep.subr.mxu0 %v519
  %763 = vmatpush1.msra.mxu0 %v518
  %764 = vmatprep.mubr.f32.mxu0 %v296
  %765 = vmatmul.mubr.f32.gmra.mrb[0].mxu0 %v295
  %v766 = vpop.f32.mrb[0].mxu0
  %v767 = vadd.f32 %v542, %v766
  %v768 = vpop.f32.mrb[0].mxu0
  %v769 = vadd.f32 %v546, %v768
  %770 = vdwg.mxu0
  %771 = vmatprep.subr.mxu0 0.0
  %772 = vmatpush1.msra.mxu0 %v303
  %773 = vmatprep.subr.mxu0 0.0
  %774 = vmatpush1.msra.mxu0 %v310
  %775 = vmatprep.subr.mxu0 0.0
  %776 = vmatpush1.msra.mxu0 %v317
  %777 = vmatprep.subr.mxu0 0.0
  %778 = vmatpush1.msra.mxu0 %v324
  %779 = vmatprep.subr.mxu0 0.0
  %780 = vmatpush1.msra.mxu0 %v331
  %781 = vmatprep.subr.mxu0 0.0
  %782 = vmatpush1.msra.mxu0 %v338
  %783 = vmatprep.subr.mxu0 0.0
  %784 = vmatpush1.msra.mxu0 %v345
  %785 = vmatprep.subr.mxu0 0.0
  %786 = vmatpush1.msra.mxu0 %v352
  %787 = vmatprep.subr.mxu0 0.0
  %788 = vmatpush1.msra.mxu0 %v359
  %789 = vmatprep.subr.mxu0 0.0
  %790 = vmatpush1.msra.mxu0 %v366
  %791 = vmatprep.subr.mxu0 0.0
  %792 = vmatpush1.msra.mxu0 %v373
  %793 = vmatprep.subr.mxu0 0.0
  %794 = vmatpush1.msra.mxu0 %v380
  %795 = vmatprep.subr.mxu0 0.0
  %796 = vmatpush1.msra.mxu0 %v387
  %797 = vmatprep.subr.mxu0 0.0
  %798 = vmatpush1.msra.mxu0 %v394
  %799 = vmatprep.subr.mxu0 0.0
  %800 = vmatpush1.msra.mxu0 %v401
  %801 = vmatprep.subr.mxu0 0.0
  %802 = vmatpush1.msra.mxu0 %v408
  %803 = vmatprep.subr.mxu0 0.0
  %804 = vmatpush1.msra.mxu0 %v415
  %805 = vmatprep.subr.mxu0 0.0
  %806 = vmatpush1.msra.mxu0 %v422
  %807 = vmatprep.subr.mxu0 0.0
  %808 = vmatpush1.msra.mxu0 %v429
  %809 = vmatprep.subr.mxu0 0.0
  %810 = vmatpush1.msra.mxu0 %v436
  %811 = vmatprep.subr.mxu0 0.0
  %812 = vmatpush1.msra.mxu0 %v443
  %813 = vmatprep.subr.mxu0 0.0
  %814 = vmatpush1.msra.mxu0 %v450
  %815 = vmatprep.subr.mxu0 0.0
  %816 = vmatpush1.msra.mxu0 %v457
  %817 = vmatprep.subr.mxu0 0.0
  %818 = vmatpush1.msra.mxu0 %v464
  %819 = vmatprep.subr.mxu0 0.0
  %820 = vmatpush1.msra.mxu0 %v471
  %821 = vmatprep.subr.mxu0 0.0
  %822 = vmatpush1.msra.mxu0 %v478
  %823 = vmatprep.subr.mxu0 0.0
  %824 = vmatpush1.msra.mxu0 %v485
  %825 = vmatprep.subr.mxu0 0.0
  %826 = vmatpush1.msra.mxu0 %v492
  %827 = vmatprep.subr.mxu0 0.0
  %828 = vmatpush1.msra.mxu0 %v499
  %829 = vmatprep.subr.mxu0 0.0
  %830 = vmatpush1.msra.mxu0 %v506
  %831 = vmatprep.subr.mxu0 0.0
  %832 = vmatpush1.msra.mxu0 %v513
  %833 = vmatprep.subr.mxu0 0.0
  %834 = vmatpush1.msra.mxu0 %v520
  %835 = vmatprep.mubr.f32.mxu0 %v296
  %836 = vmatmul.mubr.f32.gmra.mrb[0].mxu0 %v295
  %v837 = vpop.f32.mrb[0].mxu0
  %v838 = vadd.f32 %v550, %v837
  %v839 = vpop.f32.mrb[0].mxu0
  %840 = vdwg.mxu0
  %v841 = vtanh.pop %v625
  %v842 = vtanh.pop %v627
  %v843 = vtanh.pop %v696
  %v844 = vtanh.pop %v698
  %v845 = vtanh.pop %v767
  %v846 = vtanh.pop %v769
  %v847 = vtanh.pop %v838
  %848 = vst [vmem:[%s7] sm:$0xff] %v841
  %849 = vst [vmem:[%s7 + $0x8] sm:$0xff] %v842
  %850 = vst [vmem:[%s7 + $0x10] sm:$0xff] %v843
  %851 = vst [vmem:[%s7 + $0x18] sm:$0xff] %v844
  %852 = vst [vmem:[%s7 + $0x20] sm:$0xff] %v845
  %853 = vst [vmem:[%s7 + $0x28] sm:$0xff] %v846
  %854 = vst [vmem:[%s7 + $0x30] sm:$0xff] %v847
  // Predicated region
  $region30: #{generator_forward.1} parent=0 // pred_check
    _
  $region31: #{generator_forward.1} parent=0 // pred_check_branch
    %856 = sbr.rel (0) target = $region33
  $region32: #{generator_forward.1} parent=0 // pred_region
    _
  $region33: #{generator_forward.1} parent=0 // pred_fallthru
    _
  // Predicated region
  $region34: #{generator_forward.1} parent=0 // pred_check
    _
  $region35: #{generator_forward.1} parent=0 // pred_check_branch
    %858 = sbr.rel (0) target = $region37
  $region36: #{generator_forward.1} parent=0 // pred_region
    _
  $region37: #{generator_forward.1} parent=0 // pred_fallthru
    _

</llo_original>
